<compile_context>
chip_gen: v5e
topology: v5e:2x2
jax: 0.10.0
libtpu: 0.0.40
codegen_flags: <defaults>
</compile_context>

<pallas_src>
import functools

import jax
import jax.numpy as jnp
from jax import lax
from jax.experimental import pallas as pl
from jax.experimental.pallas import tpu as pltpu


# --------------------------------------------------------------------------
# per-tile helpers
# --------------------------------------------------------------------------
def _tile_context(logit_ref, batch):
    """Load the current (TM, B) row tile and return
    (x_f32, diag (TM,1), elem_mask (TM,B) f32, row_mask (TM,1) f32)."""
    x = logit_ref[...].astype(jnp.float32)
    tm, n = x.shape
    row0 = pl.program_id(0) * tm

    row_ids = lax.broadcasted_iota(jnp.int32, (tm, n), 0) + row0   # global row
    col_ids = lax.broadcasted_iota(jnp.int32, (tm, n), 1)

    row_valid = row_ids < batch                     # padded tail rows -> False
    x = jnp.where(row_valid, x, 0.0)                # neutralize padding garbage

    diag_mask = (col_ids == row_ids) & row_valid    # diagonal offset by row0
    diag = jnp.sum(jnp.where(diag_mask, x, 0.0), axis=1, keepdims=True)  # (TM,1)

    elem_mask = row_valid.astype(jnp.float32)       # columns never padded (full B)
    row_ids1 = lax.broadcasted_iota(jnp.int32, (tm, 1), 0) + row0
    row_mask = (row_ids1 < batch).astype(jnp.float32)
    return x, diag, elem_mask, row_mask


def _sum_all(t):
    """(TM, B) -> (1, 1) staying in vector land (lane reduce then sublane)."""
    return jnp.sum(jnp.sum(t, axis=1, keepdims=True), axis=0, keepdims=True)


def _softmax_pieces(x):
    m = jnp.max(x, axis=1, keepdims=True)
    e = jnp.exp(x - m)
    s = jnp.sum(e, axis=1, keepdims=True)
    return e, s


# --------------------------------------------------------------------------
# per-loss partial sums (one (1,1) value per row tile) and finalizers
# --------------------------------------------------------------------------
def _partial_top1(x, diag, em, rm):
    t = jax.nn.sigmoid(x - diag) + jax.nn.sigmoid(x * x)
    return _sum_all(t * em)


def _partial_bpr(x, diag, em, rm):
    t = -jax.nn.log_sigmoid(diag - x)
    return _sum_all(t * em)


def _partial_top1_max(x, diag, em, rm):
    e, s = _softmax_pieces(x)
    t = jax.nn.sigmoid(x - diag) + jax.nn.sigmoid(x * x)
    row_num = jnp.sum(e * t * em, axis=1, keepdims=True)        # (TM, 1)
    return jnp.sum(row_num * pl.reciprocal(s), axis=0, keepdims=True)


def _partial_bpr_max(x, diag, em, rm):
    e, s = _softmax_pieces(x)
    t = jax.nn.sigmoid(diag - x)
    row_num = jnp.sum(e * t * em, axis=1, keepdims=True)        # (TM, 1)
    return jnp.sum(row_num * pl.reciprocal(s), axis=0, keepdims=True)


def _partial_xent(x, diag, em, rm):
    m = jnp.max(x, axis=1, keepdims=True)
    lse = jnp.log(jnp.sum(jnp.exp(x - m), axis=1, keepdims=True)) + m   # (TM,1)
    return jnp.sum((lse - diag) * rm, axis=0, keepdims=True)


def _finalize_mean_all(acc, batch):
    return acc * (1.0 / (batch * batch))


def _finalize_bpr_max(acc, batch):
    return -jnp.log(acc * (1.0 / (batch * batch)))


def _finalize_mean_rows(acc, batch):
    return acc * (1.0 / batch)


_LOSSES = {
    "TOP1": (_partial_top1, _finalize_mean_all),
    "BPR": (_partial_bpr, _finalize_mean_all),
    "TOP1-max": (_partial_top1_max, _finalize_mean_all),
    "BPR-max": (_partial_bpr_max, _finalize_bpr_max),
    "CrossEntropy": (_partial_xent, _finalize_mean_rows),
}


def _make_kernel(partial_fn, finalize_fn, batch):
    def kernel(logit_ref, out_ref, acc_ref):
        step = pl.program_id(0)

        @pl.when(step == 0)
        def _():
            acc_ref[...] = jnp.zeros_like(acc_ref)

        x, diag, em, rm = _tile_context(logit_ref, batch)
        acc_ref[...] += partial_fn(x, diag, em, rm)

        @pl.when(step == pl.num_programs(0) - 1)
        def _():
            out_ref[...] = finalize_fn(acc_ref[...])

    return kernel


def _pick_tm(batch):
    """Row-tile height: large enough to hit HBM roofline, small enough that
    2 (double-buffer) x TM x B x 4 B stays well inside scoped VMEM on
    v5e (16 MiB) / v6e (32 MiB) / v7x (32 MiB scoped, 64 MiB physical)."""
    if batch <= 512:
        return batch                      # single tile equals full array dims
    tm = 512
    while tm > 8 and 2 * tm * batch * 4 > (8 << 20):
        tm //= 2
    return tm


# --------------------------------------------------------------------------
# wrapper
# --------------------------------------------------------------------------
@functools.partial(jax.jit, static_argnames=("loss_type", "tm"))
def loss_function(logit, loss_type="TOP1", tm=None):
    """Pallas equivalent of LossFunction(loss_type).forward(logit) -> scalar."""
    if loss_type not in _LOSSES:
        raise NotImplementedError(loss_type)
    batch, n = logit.shape
    assert batch == n, "expected square (batch, batch) sampled-score matrix"

    if tm is None:
        tm = _pick_tm(batch)
    tm = min(tm, batch)
    if tm != batch and tm % 8 != 0:        # sublane (8) alignment for row tiles
        tm = max(8, (tm // 8) * 8)

    partial_fn, fin = _LOSSES[loss_type]
    kernel = _make_kernel(partial_fn, functools.partial(fin, batch=batch), batch)

    out = pl.pallas_call(
        kernel,
        out_shape=jax.ShapeDtypeStruct((1, 1), jnp.float32),
        grid=(pl.cdiv(batch, tm),),
        in_specs=[pl.BlockSpec((tm, n), lambda i: (i, 0))],
        out_specs=pl.BlockSpec((1, 1), lambda i: (0, 0)),
        scratch_shapes=[pltpu.VMEM((1, 1), jnp.float32)],
        compiler_params=pltpu.CompilerParams(
            dimension_semantics=("arbitrary",)),     # reduction axis
        cost_estimate=pl.CostEstimate(
            flops=10 * batch * n,
            transcendentals=3 * batch * n,
            bytes_accessed=batch * n * logit.dtype.itemsize + 4),
    )(logit)
    return out[0, 0]


# --------------------------------------------------------------------------
# pure-JAX references (sanity checking only)
# --------------------------------------------------------------------------
def _ref(logit, loss_type):
    x = logit.astype(jnp.float32)
    d = jnp.diag(x)[:, None]
    if loss_type == "TOP1":
        return jnp.mean(jax.nn.sigmoid(x - d)) + jnp.mean(jax.nn.sigmoid(x * x))
    if loss_type == "BPR":
        return -jnp.mean(jax.nn.log_sigmoid(d - x))
    if loss_type == "TOP1-max":
        sm = jax.nn.softmax(x, axis=1)
        return jnp.mean(sm * (jax.nn.sigmoid(x - d) + jax.nn.sigmoid(x * x)))
    if loss_type == "BPR-max":
        sm = jax.nn.softmax(x, axis=1)
        return -jnp.log(jnp.mean(sm * jax.nn.sigmoid(d - x)))
    if loss_type == "CrossEntropy":
        return jnp.mean(jax.nn.logsumexp(x, axis=1) - jnp.diag(x))
    raise NotImplementedError(loss_type)


if __name__ == "__main__":
    key = jax.random.PRNGKey(0)

    # Default module configuration: LossFunction(loss_type='TOP1'), B=8.
    B = 8
    logit = jax.random.normal(key, (B, B), dtype=jnp.float32)
    out = loss_function(logit, loss_type="TOP1")
    jax.block_until_ready(out)

    # All loss types, single-tile path.
    for lt in ("TOP1", "BPR", "TOP1-max", "BPR-max", "CrossEntropy"):
        got = loss_function(logit, loss_type=lt)
        want = _ref(logit, lt)
        assert jnp.allclose(got, want, atol=1e-5, rtol=1e-5), (lt, got, want)

    # Multi-tile streaming path with a padded tail tile:
    # B=200 rows, TM=64 -> grid of 4, last tile has only 8 valid rows.
    B2 = 200
    logit2 = jax.random.normal(jax.random.PRNGKey(1), (B2, B2), dtype=jnp.float32)
    for lt in ("TOP1", "BPR", "TOP1-max", "BPR-max", "CrossEntropy"):
        got = loss_function(logit2, loss_type=lt, tm=64)
        want = _ref(logit2, lt)
        assert jnp.allclose(got, want, atol=1e-4, rtol=1e-4), (lt, got, want)

    # bf16 input (half the HBM traffic); f32 cast + accumulation happen in-kernel.
    logit3 = logit2.astype(jnp.bfloat16)
    got = loss_function(logit3, loss_type="TOP1", tm=64)
    want = _ref(logit3, "TOP1")
    assert jnp.allclose(got, want, atol=1e-4, rtol=1e-4), ("TOP1-bf16", got, want)

    print("KERNEL_OK")
</pallas_src>

<mosaic_0001>
module attributes {stable_mosaic.version = 11 : i64} {
  func.func @kernel(%arg0: i32, %arg1: memref<8x8xf32, #tpu.memory_space<vmem>>, %arg2: memref<1x1xf32, #tpu.memory_space<vmem>>, %arg3: memref<1x1xf32, #tpu.memory_space<vmem>>) attributes {dimension_semantics = [#tpu.dimension_semantics<arbitrary>], iteration_bounds = array<i64: 1>, scalar_prefetch = 0 : i64, scratch_operands = 1 : i64, tpu.core_type = #tpu.core_type<tc>, window_params = [{transform_indices = @transform_0, window_bounds = array<i64: 8, 8>}, {pipeline_mode = #tpu.pipeline_mode<synchronous>, transform_indices = @transform_1, window_bounds = array<i64: 1, 1>}]} {
    %c0_i32 = arith.constant 0 : i32
    %0 = arith.cmpi eq, %arg0, %c0_i32 : i32
    %1 = arith.extui %0 : i1 to i32
    %c0_i32_0 = arith.constant 0 : i32
    %2 = arith.cmpi ne, %1, %c0_i32_0 : i32
    scf.if %2 {
      %cst_15 = arith.constant 0.000000e+00 : f32
      %46 = vector.broadcast %cst_15 : f32 to vector<1x1xf32>
      %c0_16 = arith.constant 0 : index
      %c0_17 = arith.constant 0 : index
      %47 = vector.load %arg3[%c0_16, %c0_17] : memref<1x1xf32, #tpu.memory_space<vmem>>, vector<1x1xf32>
      tpu.vector_store %arg3[%c0_16, %c0_17], %46 {strides = array<i32>} : memref<1x1xf32, #tpu.memory_space<vmem>>, vector<1x1xf32>,
    } else {
    }
    %c0 = arith.constant 0 : index
    %c0_1 = arith.constant 0 : index
    %3 = vector.load %arg1[%c0, %c0_1] : memref<8x8xf32, #tpu.memory_space<vmem>>, vector<8x8xf32>
    %c8_i32 = arith.constant 8 : i32
    %4 = arith.muli %arg0, %c8_i32 : i32
    %5 = tpu.iota {dimensions = array<i32: 0>} : vector<8x8xi32>
    %6 = vector.broadcast %4 : i32 to vector<8x8xi32>
    %7 = arith.addi %5, %6 : vector<8x8xi32>
    %8 = tpu.iota {dimensions = array<i32: 1>} : vector<8x8xi32>
    %c8_i32_2 = arith.constant 8 : i32
    %9 = vector.broadcast %c8_i32_2 : i32 to vector<8x8xi32>
    %10 = arith.cmpi slt, %7, %9 : vector<8x8xi32>
    %cst = arith.constant 0.000000e+00 : f32
    %11 = vector.broadcast %cst : f32 to vector<8x8xf32>
    %12 = arith.select %10, %3, %11 : vector<8x8xi1>, vector<8x8xf32>
    %13 = arith.cmpi eq, %8, %7 : vector<8x8xi32>
    %14 = arith.andi %13, %10 : vector<8x8xi1>
    %cst_3 = arith.constant 0.000000e+00 : f32
    %15 = vector.broadcast %cst_3 : f32 to vector<8x8xf32>
    %16 = arith.select %14, %12, %15 : vector<8x8xi1>, vector<8x8xf32>
    %cst_4 = arith.constant dense<0.000000e+00> : vector<8xf32>
    %17 = vector.multi_reduction <add>, %16, %cst_4 [1] : vector<8x8xf32> to vector<8xf32>
    %18 = vector.shape_cast %17 : vector<8xf32> to vector<8x1xf32>
    %19 = arith.extui %10 : vector<8x8xi1> to vector<8x8xi32>
    %20 = arith.sitofp %19 : vector<8x8xi32> to vector<8x8xf32>
    %c0_5 = arith.constant 0 : index
    %c0_6 = arith.constant 0 : index
    %21 = vector.load %arg3[%c0_5, %c0_6] : memref<1x1xf32, #tpu.memory_space<vmem>>, vector<1x1xf32>
    %22 = vector.broadcast %18 : vector<8x1xf32> to vector<8x8xf32>
    %23 = arith.subf %12, %22 : vector<8x8xf32>
    %24 = arith.negf %23 : vector<8x8xf32>
    %25 = math.exp %24 : vector<8x8xf32>
    %cst_7 = arith.constant 1.000000e+00 : f32
    %26 = vector.broadcast %cst_7 : f32 to vector<8x8xf32>
    %27 = arith.addf %26, %25 : vector<8x8xf32>
    %28 = arith.divf %26, %27 : vector<8x8xf32>
    %29 = arith.mulf %12, %12 : vector<8x8xf32>
    %30 = arith.negf %29 : vector<8x8xf32>
    %31 = math.exp %30 : vector<8x8xf32>
    %cst_8 = arith.constant 1.000000e+00 : f32
    %32 = vector.broadcast %cst_8 : f32 to vector<8x8xf32>
    %33 = arith.addf %32, %31 : vector<8x8xf32>
    %34 = arith.divf %32, %33 : vector<8x8xf32>
    %35 = arith.addf %28, %34 : vector<8x8xf32>
    %36 = arith.mulf %35, %20 : vector<8x8xf32>
    %cst_9 = arith.constant dense<0.000000e+00> : vector<8xf32>
    %37 = vector.multi_reduction <add>, %36, %cst_9 [1] : vector<8x8xf32> to vector<8xf32>
    %38 = vector.shape_cast %37 : vector<8xf32> to vector<8x1xf32>
    %cst_10 = arith.constant dense<0.000000e+00> : vector<1xf32>
    %39 = vector.multi_reduction <add>, %38, %cst_10 [0] : vector<8x1xf32> to vector<1xf32>
    %40 = vector.shape_cast %39 : vector<1xf32> to vector<1x1xf32>
    %41 = arith.addf %21, %40 : vector<1x1xf32>
    %c0_11 = arith.constant 0 : index
    %c0_12 = arith.constant 0 : index
    %42 = vector.load %arg3[%c0_11, %c0_12] : memref<1x1xf32, #tpu.memory_space<vmem>>, vector<1x1xf32>
    tpu.vector_store %arg3[%c0_11, %c0_12], %41 {strides = array<i32>} : memref<1x1xf32, #tpu.memory_space<vmem>>, vector<1x1xf32>,
    %c0_i32_13 = arith.constant 0 : i32
    %43 = arith.cmpi eq, %arg0, %c0_i32_13 : i32
    %44 = arith.extui %43 : i1 to i32
    %c0_i32_14 = arith.constant 0 : i32
    %45 = arith.cmpi ne, %44, %c0_i32_14 : i32
    scf.if %45 {
      %c0_15 = arith.constant 0 : index
      %c0_16 = arith.constant 0 : index
      %46 = vector.load %arg3[%c0_15, %c0_16] : memref<1x1xf32, #tpu.memory_space<vmem>>, vector<1x1xf32>
      %cst_17 = arith.constant 1.562500e-02 : f32
      %47 = vector.broadcast %cst_17 : f32 to vector<1x1xf32>
      %48 = arith.mulf %46, %47 : vector<1x1xf32>
      %c0_18 = arith.constant 0 : index
      %c0_19 = arith.constant 0 : index
      %49 = vector.load %arg2[%c0_18, %c0_19] : memref<1x1xf32, #tpu.memory_space<vmem>>, vector<1x1xf32>
      tpu.vector_store %arg2[%c0_18, %c0_19], %48 {strides = array<i32>} : memref<1x1xf32, #tpu.memory_space<vmem>>, vector<1x1xf32>,
    } else {
    }
    return
  }
  func.func @transform_0(%arg0: i32) -> (i32, i32) {
    %c0_i32 = arith.constant 0 : i32
    %c0_i32_0 = arith.constant 0 : i32
    return %arg0, %c0_i32 : i32, i32
  }
  func.func @transform_1(%arg0: i32) -> (i32, i32) {
    %c0_i32 = arith.constant 0 : i32
    %c0_i32_0 = arith.constant 0 : i32
    %c0_i32_1 = arith.constant 0 : i32
    return %c0_i32, %c0_i32_0 : i32, i32
  }
}

</mosaic_0001>

<llo_original>
// kernel: loss_function.1
$region0: #{loss_function.1}
  #allocation0 [shape = 'u32[]', space=smem, size = 0x4, offset = 0x4, fixed_abs, tag = 'smem constant byte address 0x4 - core index']
  #allocation1 [shape = 'u32[72,128]{1,0:T(1,128)}', space=vmem, size = 0x9000, scoped, tag = 'internal scratch']
  #allocation2 [shape = 'f32[1,1]{1,0:T(1,128)}', space=vmem, size = 0x200, scoped, tag = 'scratch operand']
  %s0 = inlined_call_operand.hbm [shape: f32[8,8], index: 0, kind: input, shape index: {}]
  %s1 = inlined_call_operand.hbm [shape: f32[1,1], index: 1, kind: output, shape index: {}]
  %s2 = sld [smem:[#allocation0]]
  $region26: #{loss_function.1} parent=0
    _
  %s4 = ssub.s32 1, %s2
  %s5 = scalar_select 0, %s4, %s2
  $region1: #{loss_function.1} parent=0
    #allocation3 [shape = 'u8[4096]{0}', space=vmem, size = 0x1000, scoped, tag = 'input window, operand 0, single buffered']
    #allocation4 [shape = 's32[1]{0}', space=sflag, size = 0x4, scoped, tag = 'scoped memory for loss_function.1']
    #allocation5 [shape = 's32[1]{0}', space=sflag, size = 0x4, scoped, tag = 'scoped memory for loss_function.1']
    #allocation6 [shape = 'u8[512]{0}', space=vmem, size = 0x400, scoped, tag = 'output window, operand 0, single buffered']
    %6 = vsyncpa [#allocation4], 0
    %7 = vsyncpa [#allocation5], 0
    // Predicated region
    $region2: #{loss_function.1} parent=1 // pred_check
      _
    $region3: #{loss_function.1} parent=1 // pred_check_branch
      %9 = sbr.rel (0) target = $region5
    $region4: #{loss_function.1} parent=1 // pred_region
      %11 = vsyncadd [#allocation4], 0
      %s13 = sshll.u32 %s0, 4
      %s14 = int_to_ptr.hbm [resolvable:$true] %s13
      %s15 = sshll.u32 [#allocation3], 4
      %s16 = int_to_ptr.vmem [resolvable:$true] %s15
      %18 = dma.hbm_to_vmem [thread:$0]  %s14, 128, %s16, [#allocation4]
    $region5: #{loss_function.1} parent=1 // pred_fallthru
      _
    // Predicated region
    $region6: #{loss_function.1} parent=1 // pred_check
      _
    $region7: #{loss_function.1} parent=1 // pred_check_branch
      %20 = sbr.rel (0) target = $region9
    $region8: #{loss_function.1} parent=1 // pred_region
      %22 = dma.done [#allocation4], 128
    $region9: #{loss_function.1} parent=1 // pred_fallthru
      _
    %p23 = scmp.eq.s32.totalorder 0, 0
    // Predicated region
    $region10: #{loss_function.1} parent=1 // pred_check
      %p24 = pneg %p23
    $region11: #{loss_function.1} parent=1 // pred_check_branch
      %26 = sbr.rel (%p24) target = $region13
    $region12: #{loss_function.1} parent=1 // pred_region
      %vm27 = vcmask 0
      %28 = vst.msk [vmem:[#allocation2] sm:$0x1] %vm27, 0.0
    $region13: #{loss_function.1} parent=1 // pred_fallthru
      _
    %v29 = vld [vmem:[#allocation3] sm:$0xff]
    %s30 = smul.u32 0, 8
    %v31 = vlaneseq
    %v32 = vshrl.u32 %v31, 7
    %v33 = vstv %s30
    %v34 = vadd.s32 %v32, %v33
    %v35 = vlaneseq
    %v36 = vand.u32 %v35, 127
    %vm37 = vcmp.lt.s32.totalorder %v34, 8
    %v38 = vsel %vm37, %v29, 0.0
    %vm39 = vcmp.eq.s32.totalorder %v36, %v34
    %vm40 = vmand %vm39, %vm37
    %v41 = vsel %vm40, %v38, 0.0
    %vm42 = vcmask 64512
    %v43 = vsel %vm42, %v41, 0.0
    %44 = vadd.xlane.f32.xlu0 %v43
    %v45 = vpop.xlane.xlu0 %44
    %v46 = vsel %vm37, 1, 0
    %v47 = vcvt.s32.f32 %v46
    %v48 = vld [vmem:[#allocation2] sm:$0x1]
    %v49 = vsub.f32 %v38, %v45
    %v50 = vxor.u32 %v49, 2147483648
    %v51 = vmul.f32 %v50, 1.442695
    %v52 = vpow.pop %v51
    %v53 = vadd.f32 %v52, 1.0
    %v54 = vrcp.pop %v53
    %v55 = vmul.f32 %v53, %v54
    %v56 = vsub.f32 1.0, %v55
    %v57 = vmul.f32 %v54, %v56
    %v58 = vadd.f32 %v54, %v57
    %vm59 = vweird.f32 %v53
    %vm60 = vweird.f32 %v54
    %vm61 = vmor %vm59, %vm60
    %v62 = vsel %vm61, %v54, %v58
    %v63 = vand.u32 2147483647, %v53
    %vm64 = vcmp.eq.f32.partialorder %v63, 8.507059e+37
    %v65 = vand.u32 %v53, 2147483648
    %v66 = vor.u32 1.1754944e-38, %v65
    %v67 = vsel %vm64, %v66, %v62
    %v68 = vmul.f32 1.0, %v67
    %v69 = vmul.f32 %v38, %v38
    %v70 = vxor.u32 %v69, 2147483648
    %v71 = vmul.f32 %v70, 1.442695
    %v72 = vpow.pop %v71
    %v73 = vadd.f32 %v72, 1.0
    %v74 = vrcp.pop %v73
    %v75 = vmul.f32 %v73, %v74
    %v76 = vsub.f32 1.0, %v75
    %v77 = vmul.f32 %v74, %v76
    %v78 = vadd.f32 %v74, %v77
    %vm79 = vweird.f32 %v73
    %vm80 = vweird.f32 %v74
    %vm81 = vmor %vm79, %vm80
    %v82 = vsel %vm81, %v74, %v78
    %v83 = vand.u32 2147483647, %v73
    %vm84 = vcmp.eq.f32.partialorder %v83, 8.507059e+37
    %v85 = vand.u32 %v73, 2147483648
    %v86 = vor.u32 1.1754944e-38, %v85
    %v87 = vsel %vm84, %v86, %v82
    %v88 = vmul.f32 1.0, %v87
    %v89 = vadd.f32 %v68, %v88
    %v90 = vmul.f32 %v89, %v47
    %v91 = vsel %vm42, %v90, 0.0
    %92 = vadd.xlane.f32.xlu0 %v91
    %v93 = vpop.xlane.xlu0 %92
    %v94 = vrot.slane %v93, 4
    %v95 = vadd.f32 %v93, %v94
    %v96 = vrot.slane %v95, 2
    %v97 = vadd.f32 %v95, %v96
    %v98 = vrot.slane %v97, 1
    %v99 = vadd.f32 %v97, %v98
    %v100 = vadd.f32 %v48, %v99
    %vm101 = vcmask 0
    %102 = vst.msk [vmem:[#allocation2] sm:$0x1] %vm101, %v100
    // Predicated region
    $region14: #{loss_function.1} parent=1 // pred_check
      %p103 = pneg %p23
    $region15: #{loss_function.1} parent=1 // pred_check_branch
      %105 = sbr.rel (%p103) target = $region17
    $region16: #{loss_function.1} parent=1 // pred_region
      %v106 = vld [vmem:[#allocation2] sm:$0x1]
      %v107 = vmul.f32 %v106, 0.015625
      %108 = vst.msk [vmem:[#allocation6] sm:$0x1] %vm101, %v107
    $region17: #{loss_function.1} parent=1 // pred_fallthru
      _
    // Predicated region
    $region18: #{loss_function.1} parent=1 // pred_check
      _
    $region19: #{loss_function.1} parent=1 // pred_check_branch
      %110 = sbr.rel (0) target = $region21
    $region20: #{loss_function.1} parent=1 // pred_region
      %112 = vsyncadd [#allocation5], 0
      %s114 = sshll.u32 [#allocation6], 4
      %s115 = int_to_ptr.vmem [resolvable:$true] %s114
      %s116 = sshll.u32 %s1, 4
      %s117 = int_to_ptr.hbm [resolvable:$true] %s116
      %119 = dma.vmem_to_hbm [thread:$0]  %s115, 16, %s117, [#allocation5]
    $region21: #{loss_function.1} parent=1 // pred_fallthru
      _
    // Predicated region
    $region22: #{loss_function.1} parent=1 // pred_check
      _
    $region23: #{loss_function.1} parent=1 // pred_check_branch
      %121 = sbr.rel (0) target = $region25
    $region24: #{loss_function.1} parent=1 // pred_region
      %123 = dma.done [#allocation5], 16
    $region25: #{loss_function.1} parent=1 // pred_fallthru
      _
    %124 = vsyncpa [#allocation4], 1
    %125 = vsyncpa [#allocation5], 1

</llo_original>
